<compile_context>
chip_gen: v5e
topology: v5e:2x2
jax: 0.10.0
libtpu: 0.0.40
codegen_flags: <defaults>
</compile_context>

<pallas_src>
import jax
import jax.numpy as jnp
from jax.experimental import pallas as pl
from jax.experimental.pallas import tpu as pltpu


_LANE_CHOICES = (512, 256, 128)          # lane-dense last dims (multiples of 128)
_TARGET_BLOCK_BYTES = 4 * 1024 * 1024    # ~4 MiB per tile (2 in + 2 out bufs = ~16 MiB)
_VMEM_LIMIT_BYTES = 48 * 1024 * 1024     # safe on v5e/v6e (128 MiB) and v7x (64 MiB)
_MIN_GRID_STEPS = 4                      # let v7x shard the row loop across 2 TCs
_DEFAULT_MIN_PALLAS_ELEMS = 64 * 1024    # below this, plain XLA fusion wins


def _scale_kernel(scale_ref, x_ref, o_ref):
    # scale_ref: (1,) f32 scalar in SMEM; x_ref / o_ref: (tile_rows, lanes) in VMEM.
    s = scale_ref[0].astype(x_ref.dtype)          # one scalar cast; native-dtype multiply
    o_ref[...] = (x_ref[...] * s).astype(o_ref.dtype)


def _pick_lanes(n):
    for cand in _LANE_CHOICES:
        if n % cand == 0:
            return cand
    return None


def _pick_tile_rows(rows, lanes, itemsize):
    """Multiple of 8 (or full extent) tile height, ~4 MiB, >= _MIN_GRID_STEPS steps."""
    if rows <= 8:
        return rows                                  # full-extent block is always legal
    max_rows = max(8, (_TARGET_BLOCK_BYTES // (lanes * itemsize)) // 8 * 8)
    # Aim for at least _MIN_GRID_STEPS grid steps so both v7x TCs get work.
    per_step = -(-rows // _MIN_GRID_STEPS)           # cdiv
    per_step = max(8, ((per_step + 7) // 8) * 8)     # round up to a multiple of 8
    tile_rows = min(max_rows, per_step, (rows // 8) * 8)
    return max(8, tile_rows)


def scale_forward(x, scale, *, min_pallas_elems=_DEFAULT_MIN_PALLAS_ELEMS):
    """x: arbitrary-rank float array (e.g. NCHW). scale: shape (1,) learnable scalar."""
    scale_f32 = jnp.asarray(scale, jnp.float32).reshape(-1)[:1]
    n = x.size
    orig_shape = x.shape

    lanes = _pick_lanes(n)

    # Tiny tensors or ragged flat sizes: a fused XLA multiply is the optimal
    # (single read + single write) path; padding around a pallas_call would
    # only add extra HBM passes.
    if n < min_pallas_elems or lanes is None:
        return (x * scale_f32[0].astype(x.dtype))

    rows = n // lanes
    x2d = x.reshape(rows, lanes)                     # free view of contiguous data

    itemsize = jnp.dtype(x.dtype).itemsize
    tile_rows = _pick_tile_rows(rows, lanes, itemsize)
    grid = (pl.cdiv(rows, tile_rows),)

    out2d = pl.pallas_call(
        _scale_kernel,
        out_shape=jax.ShapeDtypeStruct((rows, lanes), x.dtype),
        grid_spec=pl.GridSpec(
            grid=grid,
            in_specs=[
                pl.BlockSpec(memory_space=pltpu.MemorySpace.SMEM),   # f32 scale scalar
                pl.BlockSpec((tile_rows, lanes), lambda i: (i, 0)),  # input tile
            ],
            out_specs=pl.BlockSpec((tile_rows, lanes), lambda i: (i, 0)),
        ),
        compiler_params=pltpu.CompilerParams(
            dimension_semantics=("parallel",),       # shard rows across v7x's 2 TCs
            vmem_limit_bytes=_VMEM_LIMIT_BYTES,      # headroom for 4 x ~4 MiB buffers
        ),
    )(scale_f32, x2d)

    return out2d.reshape(orig_shape)


if __name__ == "__main__":
    key = jax.random.PRNGKey(0)

    # Deterministic parameter matching nn.Parameter(torch.FloatTensor([1.5]))
    scale_param = jnp.array([1.5], dtype=jnp.float32)

    # 1) Spec-sized NCHW input (2, 4, 16, 16); force the Pallas path so the
    #    kernel itself is exercised even though the dispatch threshold would
    #    normally route this tiny tensor to plain XLA.
    x_small = jax.random.normal(key, (2, 4, 16, 16), dtype=jnp.float32)
    out_small = jax.block_until_ready(
        scale_forward(x_small, scale_param, min_pallas_elems=0)
    )
    ref_small = x_small * scale_param[0]
    assert out_small.shape == x_small.shape and out_small.dtype == x_small.dtype
    assert jnp.allclose(out_small, ref_small, atol=1e-6, rtol=1e-6)

    # 2) Medium input whose flattened size is a multiple of 512 but whose last
    #    dim is ragged (129): exercises the free flat-reshape path and a
    #    multi-step row grid (>= 4 steps) with a partial final block.
    x_med = jax.random.normal(key, (4, 16, 64, 129), dtype=jnp.float32)
    out_med = jax.block_until_ready(
        scale_forward(x_med, scale_param, min_pallas_elems=0)
    )
    ref_med = x_med * scale_param[0]
    assert out_med.shape == x_med.shape and out_med.dtype == x_med.dtype
    assert jnp.allclose(out_med, ref_med, atol=1e-6, rtol=1e-6)

    # 3) bf16 input: native-dtype multiply inside the kernel.
    x_bf16 = jax.random.normal(key, (8, 4, 32, 32), dtype=jnp.bfloat16)
    out_bf16 = jax.block_until_ready(
        scale_forward(x_bf16, scale_param, min_pallas_elems=0)
    )
    ref_bf16 = x_bf16 * scale_param[0].astype(jnp.bfloat16)
    assert out_bf16.shape == x_bf16.shape and out_bf16.dtype == x_bf16.dtype
    assert jnp.allclose(out_bf16.astype(jnp.float32),
                        ref_bf16.astype(jnp.float32), atol=1e-2, rtol=1e-2)

    # 4) Ragged flat size (not a multiple of 128) -> XLA fallback path.
    x_ragged = jax.random.normal(key, (3, 5, 7), dtype=jnp.float32)
    out_ragged = jax.block_until_ready(scale_forward(x_ragged, scale_param))
    assert jnp.allclose(out_ragged, x_ragged * scale_param[0], atol=1e-6, rtol=1e-6)

    # 5) Default dispatch (tiny tensor -> fused XLA multiply) still correct.
    out_xla = jax.block_until_ready(scale_forward(x_small, scale_param))
    assert jnp.allclose(out_xla, ref_small, atol=1e-6, rtol=1e-6)

    print("KERNEL_OK")
</pallas_src>

<mosaic_0001>
module attributes {stable_mosaic.version = 11 : i64} {
  func.func @_scale_kernel(%arg0: i32, %arg1: memref<1xf32, #tpu.memory_space<smem>>, %arg2: memref<4x512xf32, #tpu.memory_space<vmem>>, %arg3: memref<4x512xf32, #tpu.memory_space<vmem>>) attributes {dimension_semantics = [#tpu.dimension_semantics<parallel>], iteration_bounds = array<i64: 1>, scalar_prefetch = 0 : i64, scratch_operands = 0 : i64, tpu.core_type = #tpu.core_type<tc>, window_params = [{transform_indices = @transform_0, window_bounds = array<i64: 1>}, {transform_indices = @transform_1, window_bounds = array<i64: 4, 512>}, {transform_indices = @transform_2, window_bounds = array<i64: 4, 512>}]} {
    %c0 = arith.constant 0 : index
    %0 = memref.load %arg1[%c0] : memref<1xf32, #tpu.memory_space<smem>>
    %c0_0 = arith.constant 0 : index
    %c0_1 = arith.constant 0 : index
    %1 = vector.load %arg2[%c0_0, %c0_1] : memref<4x512xf32, #tpu.memory_space<vmem>>, vector<4x512xf32>
    %2 = vector.broadcast %0 : f32 to vector<4x512xf32>
    %3 = arith.mulf %1, %2 : vector<4x512xf32>
    %c0_2 = arith.constant 0 : index
    %c0_3 = arith.constant 0 : index
    %4 = vector.load %arg3[%c0_2, %c0_3] : memref<4x512xf32, #tpu.memory_space<vmem>>, vector<4x512xf32>
    tpu.vector_store %arg3[%c0_2, %c0_3], %3 {strides = array<i32>} : memref<4x512xf32, #tpu.memory_space<vmem>>, vector<4x512xf32>,
    return
  }
  func.func @transform_0(%arg0: i32) -> i32 {
    %c0_i32 = arith.constant 0 : i32
    %c0_i32_0 = arith.constant 0 : i32
    return %c0_i32 : i32
  }
  func.func @transform_1(%arg0: i32) -> (i32, i32) {
    %c0_i32 = arith.constant 0 : i32
    %c0_i32_0 = arith.constant 0 : i32
    return %arg0, %c0_i32 : i32, i32
  }
  func.func @transform_2(%arg0: i32) -> (i32, i32) {
    %c0_i32 = arith.constant 0 : i32
    %c0_i32_0 = arith.constant 0 : i32
    return %arg0, %c0_i32 : i32, i32
  }
}

</mosaic_0001>

<llo_original>
// kernel: tpu_custom_call.1
$region0: #{tpu_custom_call.1}
  #allocation0 [shape = 'u32[]', space=smem, size = 0x4, offset = 0x4, fixed_abs, tag = 'smem constant byte address 0x4 - core index']
  #allocation1 [shape = 'u32[72,128]{1,0:T(1,128)}', space=vmem, size = 0x9000, scoped, tag = 'internal scratch']
  #allocation2 [shape = 'f32[1]{0:T(128)S(6)}', space=smem, size = 0x200, scoped, tag = 'scoped memory for tpu_custom_call.1']
  %s0 = inlined_call_operand.<no memory space> [shape: f32[1], index: 0, kind: input, shape index: {}]
  %s1 = inlined_call_operand.hbm [shape: f32[4,512], index: 1, kind: input, shape index: {}]
  %s2 = inlined_call_operand.hbm [shape: f32[4,512], index: 2, kind: output, shape index: {}]
  %s3 = sld [smem:[#allocation0]]
  $region22: #{tpu_custom_call.1} parent=0
    _
  %s5 = ssub.s32 1, %s3
  %s6 = scalar_select 0, %s5, %s3
  %7 = sst [smem:[#allocation2]] %s0
  $region1: #{tpu_custom_call.1} parent=0
    #allocation3 [shape = 'u8[8192]{0}', space=vmem, size = 0x2000, scoped, tag = 'input window, operand 1, single buffered']
    #allocation4 [shape = 's32[1]{0}', space=sflag, size = 0x4, scoped, tag = 'scoped memory for tpu_custom_call.1']
    #allocation5 [shape = 's32[1]{0}', space=sflag, size = 0x4, scoped, tag = 'scoped memory for tpu_custom_call.1']
    #allocation6 [shape = 'u8[8192]{0}', space=vmem, size = 0x2000, scoped, tag = 'output window, operand 0, single buffered']
    %8 = vsyncpa [#allocation4], 0
    %9 = vsyncpa [#allocation5], 0
    // Predicated region
    $region2: #{tpu_custom_call.1} parent=1 // pred_check
      _
    $region3: #{tpu_custom_call.1} parent=1 // pred_check_branch
      %11 = sbr.rel (0) target = $region5
    $region4: #{tpu_custom_call.1} parent=1 // pred_region
      _
    $region5: #{tpu_custom_call.1} parent=1 // pred_fallthru
      _
    // Predicated region
    $region6: #{tpu_custom_call.1} parent=1 // pred_check
      _
    $region7: #{tpu_custom_call.1} parent=1 // pred_check_branch
      %13 = sbr.rel (0) target = $region9
    $region8: #{tpu_custom_call.1} parent=1 // pred_region
      %15 = vsyncadd [#allocation4], 0
      %s17 = sshll.u32 %s1, 4
      %s18 = int_to_ptr.hbm [resolvable:$true] %s17
      %s19 = sshll.u32 [#allocation3], 4
      %s20 = int_to_ptr.vmem [resolvable:$true] %s19
      %22 = dma.hbm_to_vmem [thread:$0]  %s18, 256, %s20, [#allocation4]
    $region9: #{tpu_custom_call.1} parent=1 // pred_fallthru
      _
    // Predicated region
    $region10: #{tpu_custom_call.1} parent=1 // pred_check
      _
    $region11: #{tpu_custom_call.1} parent=1 // pred_check_branch
      %24 = sbr.rel (0) target = $region13
    $region12: #{tpu_custom_call.1} parent=1 // pred_region
      %26 = dma.done [#allocation4], 256
    $region13: #{tpu_custom_call.1} parent=1 // pred_fallthru
      _
    %s27 = sld [smem:[#allocation2]]
    %v28 = vld [vmem:[#allocation3] sm:$0xff]
    %v29 = vld [vmem:[#allocation3 + $0x8] sm:$0xff]
    %v30 = vstv %s27
    %v31 = vmul.f32 %v28, %v30
    %v32 = vmul.f32 %v29, %v30
    %33 = vst [vmem:[#allocation6] sm:$0xff] %v31
    %34 = vst [vmem:[#allocation6 + $0x8] sm:$0xff] %v32
    // Predicated region
    $region14: #{tpu_custom_call.1} parent=1 // pred_check
      _
    $region15: #{tpu_custom_call.1} parent=1 // pred_check_branch
      %36 = sbr.rel (0) target = $region17
    $region16: #{tpu_custom_call.1} parent=1 // pred_region
      %38 = vsyncadd [#allocation5], 0
      %s40 = sshll.u32 [#allocation6], 4
      %s41 = int_to_ptr.vmem [resolvable:$true] %s40
      %s42 = sshll.u32 %s2, 4
      %s43 = int_to_ptr.hbm [resolvable:$true] %s42
      %45 = dma.vmem_to_hbm [thread:$0]  %s41, 256, %s43, [#allocation5]
    $region17: #{tpu_custom_call.1} parent=1 // pred_fallthru
      _
    // Predicated region
    $region18: #{tpu_custom_call.1} parent=1 // pred_check
      _
    $region19: #{tpu_custom_call.1} parent=1 // pred_check_branch
      %47 = sbr.rel (0) target = $region21
    $region20: #{tpu_custom_call.1} parent=1 // pred_region
      %49 = dma.done [#allocation5], 256
    $region21: #{tpu_custom_call.1} parent=1 // pred_fallthru
      _
    %50 = vsyncpa [#allocation4], 1
    %51 = vsyncpa [#allocation5], 1

</llo_original>
